<compile_context>
chip_gen: v5e
topology: v5e:2x2
jax: 0.10.0
libtpu: 0.0.40
codegen_flags: <defaults>
</compile_context>

<pallas_src>
import math
import functools

import jax
import jax.numpy as jnp
from jax.experimental import pallas as pl
from jax.experimental.pallas import tpu as pltpu

LANE = 128      # lane width: pad weight output dims to a multiple of this
SUBLANE = 8     # sublane width: batch tile must be a multiple of this


def _round_up(n, m):
    return ((n + m - 1) // m) * m


def _cdiv(a, b):
    return (a + b - 1) // b


def actor_kernel(x_ref, w1_ref, b1_ref, w2_ref, b2_ref, w3_ref, b3_ref, o_ref):
    # fc1 + relu: (tb, sdim) @ (sdim, hid_p) with K = raw state_dim (Mosaic
    # handles the small-K MXU contraction); f32 accumulate, f32 elementwise.
    h1 = jnp.dot(x_ref[...], w1_ref[...], preferred_element_type=jnp.float32)
    h1 = jnp.maximum(h1 + b1_ref[...], 0.0)
    # fc2 + relu
    h2 = jnp.dot(h1.astype(w2_ref.dtype), w2_ref[...],
                 preferred_element_type=jnp.float32)
    h2 = jnp.maximum(h2 + b2_ref[...], 0.0)
    # fc3 + tanh * (pi/6); lane-dense (128-wide) store, cast on store only.
    h3 = jnp.dot(h2.astype(w3_ref.dtype), w3_ref[...],
                 preferred_element_type=jnp.float32)
    o_ref[...] = (jnp.tanh(h3 + b3_ref[...]) * (math.pi / 6.0)).astype(o_ref.dtype)


def pad_actor_params(w1, b1, w2, b2, w3, b3, dtype=jnp.bfloat16):
    """Prepare [in, out] weights for the kernel.

    * W1 is padded only on its OUTPUT dim (its input dim stays state_dim so
      the streamed state needs no lane padding).
    * W2 / W3 are padded on both dims to multiples of 128.
    * Weights are cast to `dtype` (bf16 recommended on all generations);
      biases stay f32 so bias-add / relu / tanh run on the f32 VPU/EUP path.
    Zero padding is exact: padded hidden units get zero weights and zero
    bias -> relu(0)=0 and feed zero weight rows; padded output lanes are
    sliced off in the wrapper.
    """
    def pad_w(w, pad_in=True):
        i, o = w.shape
        ip = _round_up(i, LANE) if pad_in else i
        op = _round_up(o, LANE)
        out = jnp.zeros((ip, op), dtype)
        return out.at[:i, :o].set(w.astype(dtype))

    def pad_b(b):
        b = jnp.reshape(b, (1, -1))
        o = b.shape[-1]
        out = jnp.zeros((1, _round_up(o, LANE)), jnp.float32)
        return out.at[:, :o].set(b.astype(jnp.float32))

    return (pad_w(w1, pad_in=False), pad_b(b1),
            pad_w(w2), pad_b(b2),
            pad_w(w3), pad_b(b3))


@functools.partial(jax.jit, static_argnames=("action_dim", "block_batch"))
def actor_forward(state, params, *, action_dim, block_batch=256):
    """state: [B, state_dim] f32; params: output of pad_actor_params.

    Returns [B, action_dim] f32.
    """
    w1, b1, w2, b2, w3, b3 = params
    B, sdim = state.shape
    assert w1.shape[0] == sdim, "W1 input dim must equal raw state_dim"
    hid_p = w1.shape[1]
    out_p = w3.shape[1]
    dtype = w1.dtype

    # --- batch tiling -------------------------------------------------------
    # Balance tiles across ceil(B / block_batch) steps (no padding B=1025 up
    # to 2048), and force >= 2 steps when the batch allows so the "parallel"
    # axis shards across both v7x TensorCores (harmless on v5e/v6e).
    n_steps = max(1, _cdiv(B, block_batch))
    if n_steps == 1 and B >= 2 * SUBLANE:
        n_steps = 2
    tb = _round_up(_cdiv(B, n_steps), SUBLANE)
    bp = _round_up(B, tb)

    # Cast the streamed operand to the matmul dtype; pad only batch rows
    # (no lane padding of the state). Skip the pad entirely when aligned.
    x = state.astype(dtype)
    if bp != B:
        x = jnp.zeros((bp, sdim), dtype).at[:B].set(x)

    const2 = lambda i: (0, 0)   # weights/biases: VMEM-resident across steps

    # --- scoped VMEM budget -------------------------------------------------
    itemsize = jnp.dtype(dtype).itemsize
    weight_bytes = sum(int(p.size) * p.dtype.itemsize
                       for p in (w1, b1, w2, b2, w3, b3))
    stream_bytes = tb * sdim * itemsize + tb * out_p * itemsize
    vmem_limit = 2 * weight_bytes + 2 * stream_bytes + (8 << 20)
    vmem_limit = int(min(max(vmem_limit, 32 << 20), 128 << 20))

    out = pl.pallas_call(
        actor_kernel,
        out_shape=jax.ShapeDtypeStruct((bp, out_p), dtype),
        grid=(bp // tb,),
        in_specs=[
            # streamed state tile: last block dim == full array dim (legal)
            pl.BlockSpec((tb, sdim), lambda i: (i, 0)),
            pl.BlockSpec((sdim, hid_p), const2),   # W1 (resident)
            pl.BlockSpec((1, hid_p), const2),      # b1
            pl.BlockSpec((hid_p, hid_p), const2),  # W2
            pl.BlockSpec((1, hid_p), const2),      # b2
            pl.BlockSpec((hid_p, out_p), const2),  # W3
            pl.BlockSpec((1, out_p), const2),      # b3
        ],
        out_specs=pl.BlockSpec((tb, out_p), lambda i: (i, 0)),
        compiler_params=pltpu.CompilerParams(
            dimension_semantics=("parallel",),     # megacore split on v7x
            vmem_limit_bytes=vmem_limit),
    )(x, w1, b1, w2, b2, w3, b3)

    return out[:B, :action_dim].astype(jnp.float32)


def init_linear_params(key, fan_in, fan_out):
    # PyTorch nn.Linear default init: U(-1/sqrt(fan_in), 1/sqrt(fan_in))
    kw, kb = jax.random.split(key)
    bound = 1.0 / math.sqrt(fan_in)
    w = jax.random.uniform(kw, (fan_in, fan_out), jnp.float32, -bound, bound)
    b = jax.random.uniform(kb, (fan_out,), jnp.float32, -bound, bound)
    return w, b


def _reference(state, w1, b1, w2, b2, w3, b3):
    x = jnp.maximum(state @ w1 + b1, 0.0)
    x = jnp.maximum(x @ w2 + b2, 0.0)
    return jnp.tanh(x @ w3 + b3) * (math.pi / 6.0)


if __name__ == "__main__":
    state_dim = 16
    action_dim = 8
    hidden_dim = 32
    batch = 8

    key = jax.random.PRNGKey(0)
    k_state, k_state2, k1, k2, k3 = jax.random.split(key, 5)

    state = jax.random.normal(k_state, (batch, state_dim), jnp.float32)
    w1, b1 = init_linear_params(k1, state_dim, hidden_dim)
    w2, b2 = init_linear_params(k2, hidden_dim, hidden_dim)
    w3, b3 = init_linear_params(k3, hidden_dim, action_dim)

    ref = _reference(state, w1, b1, w2, b2, w3, b3)

    # f32 path (exact vs. reference)
    params_f32 = pad_actor_params(w1, b1, w2, b2, w3, b3, dtype=jnp.float32)
    out_f32 = actor_forward(state, params_f32, action_dim=action_dim)
    jax.block_until_ready(out_f32)
    assert out_f32.shape == (batch, action_dim)
    assert jnp.allclose(out_f32, ref, atol=1e-5, rtol=1e-5)

    # bf16 operand/output path (default; recommended on v5e/v6e/v7x)
    params_bf16 = pad_actor_params(w1, b1, w2, b2, w3, b3, dtype=jnp.bfloat16)
    out_bf16 = actor_forward(state, params_bf16, action_dim=action_dim)
    jax.block_until_ready(out_bf16)
    assert out_bf16.shape == (batch, action_dim)
    assert jnp.allclose(out_bf16, ref, atol=5e-2, rtol=5e-2)

    # Non-aligned batch: exercises batch-row padding + the forced 2-step grid
    # (v7x megacore path); padded rows are sliced off before return.
    batch2 = 20
    state2 = jax.random.normal(k_state2, (batch2, state_dim), jnp.float32)
    ref2 = _reference(state2, w1, b1, w2, b2, w3, b3)
    out2 = actor_forward(state2, params_f32, action_dim=action_dim)
    jax.block_until_ready(out2)
    assert out2.shape == (batch2, action_dim)
    assert jnp.allclose(out2, ref2, atol=1e-5, rtol=1e-5)

    print("KERNEL_OK")
</pallas_src>

<mosaic_0001>
module attributes {stable_mosaic.version = 11 : i64} {
  func.func @actor_kernel(%arg0: i32, %arg1: memref<8x16xf32, #tpu.memory_space<vmem>>, %arg2: memref<16x128xf32, #tpu.memory_space<vmem>>, %arg3: memref<1x128xf32, #tpu.memory_space<vmem>>, %arg4: memref<128x128xf32, #tpu.memory_space<vmem>>, %arg5: memref<1x128xf32, #tpu.memory_space<vmem>>, %arg6: memref<128x128xf32, #tpu.memory_space<vmem>>, %arg7: memref<1x128xf32, #tpu.memory_space<vmem>>, %arg8: memref<8x128xf32, #tpu.memory_space<vmem>>) attributes {dimension_semantics = [#tpu.dimension_semantics<parallel>], iteration_bounds = array<i64: 1>, scalar_prefetch = 0 : i64, scratch_operands = 0 : i64, tpu.core_type = #tpu.core_type<tc>, window_params = [{transform_indices = @transform_0, window_bounds = array<i64: 8, 16>}, {pipeline_mode = #tpu.pipeline_mode<synchronous>, transform_indices = @transform_1, window_bounds = array<i64: 16, 128>}, {pipeline_mode = #tpu.pipeline_mode<synchronous>, transform_indices = @transform_2, window_bounds = array<i64: 1, 128>}, {pipeline_mode = #tpu.pipeline_mode<synchronous>, transform_indices = @transform_3, window_bounds = array<i64: 128, 128>}, {pipeline_mode = #tpu.pipeline_mode<synchronous>, transform_indices = @transform_4, window_bounds = array<i64: 1, 128>}, {pipeline_mode = #tpu.pipeline_mode<synchronous>, transform_indices = @transform_5, window_bounds = array<i64: 128, 128>}, {pipeline_mode = #tpu.pipeline_mode<synchronous>, transform_indices = @transform_6, window_bounds = array<i64: 1, 128>}, {transform_indices = @transform_7, window_bounds = array<i64: 8, 128>}]} {
    %c0 = arith.constant 0 : index
    %c0_0 = arith.constant 0 : index
    %0 = vector.load %arg1[%c0, %c0_0] : memref<8x16xf32, #tpu.memory_space<vmem>>, vector<8x16xf32>
    %c0_1 = arith.constant 0 : index
    %c0_2 = arith.constant 0 : index
    %1 = vector.load %arg2[%c0_1, %c0_2] : memref<16x128xf32, #tpu.memory_space<vmem>>, vector<16x128xf32>
    %cst = arith.constant dense<0.000000e+00> : vector<8x128xf32>
    %2 = tpu.matmul %0, %1, %cst {dimension_numbers = #tpu.dot_dimension_numbers<[1], [0], [0], [1], [0, 0, 1, 1], [], []>} : vector<8x16xf32>, vector<16x128xf32>, vector<8x128xf32> -> vector<8x128xf32>
    %c0_3 = arith.constant 0 : index
    %c0_4 = arith.constant 0 : index
    %3 = vector.load %arg3[%c0_3, %c0_4] : memref<1x128xf32, #tpu.memory_space<vmem>>, vector<1x128xf32>
    %4 = vector.broadcast %3 : vector<1x128xf32> to vector<8x128xf32>
    %5 = arith.addf %2, %4 : vector<8x128xf32>
    %cst_5 = arith.constant 0.000000e+00 : f32
    %6 = vector.broadcast %cst_5 : f32 to vector<8x128xf32>
    %7 = arith.maximumf %5, %6 : vector<8x128xf32>
    %c0_6 = arith.constant 0 : index
    %c0_7 = arith.constant 0 : index
    %8 = vector.load %arg4[%c0_6, %c0_7] : memref<128x128xf32, #tpu.memory_space<vmem>>, vector<128x128xf32>
    %cst_8 = arith.constant dense<0.000000e+00> : vector<8x128xf32>
    %9 = tpu.matmul %7, %8, %cst_8 {dimension_numbers = #tpu.dot_dimension_numbers<[1], [0], [0], [1], [0, 0, 1, 1], [], []>} : vector<8x128xf32>, vector<128x128xf32>, vector<8x128xf32> -> vector<8x128xf32>
    %c0_9 = arith.constant 0 : index
    %c0_10 = arith.constant 0 : index
    %10 = vector.load %arg5[%c0_9, %c0_10] : memref<1x128xf32, #tpu.memory_space<vmem>>, vector<1x128xf32>
    %11 = vector.broadcast %10 : vector<1x128xf32> to vector<8x128xf32>
    %12 = arith.addf %9, %11 : vector<8x128xf32>
    %cst_11 = arith.constant 0.000000e+00 : f32
    %13 = vector.broadcast %cst_11 : f32 to vector<8x128xf32>
    %14 = arith.maximumf %12, %13 : vector<8x128xf32>
    %c0_12 = arith.constant 0 : index
    %c0_13 = arith.constant 0 : index
    %15 = vector.load %arg6[%c0_12, %c0_13] : memref<128x128xf32, #tpu.memory_space<vmem>>, vector<128x128xf32>
    %cst_14 = arith.constant dense<0.000000e+00> : vector<8x128xf32>
    %16 = tpu.matmul %14, %15, %cst_14 {dimension_numbers = #tpu.dot_dimension_numbers<[1], [0], [0], [1], [0, 0, 1, 1], [], []>} : vector<8x128xf32>, vector<128x128xf32>, vector<8x128xf32> -> vector<8x128xf32>
    %c0_15 = arith.constant 0 : index
    %c0_16 = arith.constant 0 : index
    %17 = vector.load %arg7[%c0_15, %c0_16] : memref<1x128xf32, #tpu.memory_space<vmem>>, vector<1x128xf32>
    %18 = vector.broadcast %17 : vector<1x128xf32> to vector<8x128xf32>
    %19 = arith.addf %16, %18 : vector<8x128xf32>
    %20 = math.tanh %19 : vector<8x128xf32>
    %cst_17 = arith.constant 0.52359879 : f32
    %21 = vector.broadcast %cst_17 : f32 to vector<8x128xf32>
    %22 = arith.mulf %20, %21 : vector<8x128xf32>
    %c0_18 = arith.constant 0 : index
    %c0_19 = arith.constant 0 : index
    %23 = vector.load %arg8[%c0_18, %c0_19] : memref<8x128xf32, #tpu.memory_space<vmem>>, vector<8x128xf32>
    tpu.vector_store %arg8[%c0_18, %c0_19], %22 {strides = array<i32>} : memref<8x128xf32, #tpu.memory_space<vmem>>, vector<8x128xf32>,
    return
  }
  func.func @transform_0(%arg0: i32) -> (i32, i32) {
    %c0_i32 = arith.constant 0 : i32
    %c0_i32_0 = arith.constant 0 : i32
    return %arg0, %c0_i32 : i32, i32
  }
  func.func @transform_1(%arg0: i32) -> (i32, i32) {
    %c0_i32 = arith.constant 0 : i32
    %c0_i32_0 = arith.constant 0 : i32
    %c0_i32_1 = arith.constant 0 : i32
    return %c0_i32, %c0_i32_0 : i32, i32
  }
  func.func @transform_2(%arg0: i32) -> (i32, i32) {
    %c0_i32 = arith.constant 0 : i32
    %c0_i32_0 = arith.constant 0 : i32
    %c0_i32_1 = arith.constant 0 : i32
    return %c0_i32, %c0_i32_0 : i32, i32
  }
  func.func @transform_3(%arg0: i32) -> (i32, i32) {
    %c0_i32 = arith.constant 0 : i32
    %c0_i32_0 = arith.constant 0 : i32
    %c0_i32_1 = arith.constant 0 : i32
    return %c0_i32, %c0_i32_0 : i32, i32
  }
  func.func @transform_4(%arg0: i32) -> (i32, i32) {
    %c0_i32 = arith.constant 0 : i32
    %c0_i32_0 = arith.constant 0 : i32
    %c0_i32_1 = arith.constant 0 : i32
    return %c0_i32, %c0_i32_0 : i32, i32
  }
  func.func @transform_5(%arg0: i32) -> (i32, i32) {
    %c0_i32 = arith.constant 0 : i32
    %c0_i32_0 = arith.constant 0 : i32
    %c0_i32_1 = arith.constant 0 : i32
    return %c0_i32, %c0_i32_0 : i32, i32
  }
  func.func @transform_6(%arg0: i32) -> (i32, i32) {
    %c0_i32 = arith.constant 0 : i32
    %c0_i32_0 = arith.constant 0 : i32
    %c0_i32_1 = arith.constant 0 : i32
    return %c0_i32, %c0_i32_0 : i32, i32
  }
  func.func @transform_7(%arg0: i32) -> (i32, i32) {
    %c0_i32 = arith.constant 0 : i32
    %c0_i32_0 = arith.constant 0 : i32
    return %arg0, %c0_i32 : i32, i32
  }
}

</mosaic_0001>

<llo_original>
// kernel: actor_forward.1
$region0: #{actor_forward.1}
  #allocation0 [shape = 'u32[]', space=smem, size = 0x4, offset = 0x4, fixed_abs, tag = 'smem constant byte address 0x4 - core index']
  #allocation1 [shape = 'u32[72,128]{1,0:T(1,128)}', space=vmem, size = 0x9000, scoped, tag = 'internal scratch']
  %s0 = inlined_call_operand.hbm [shape: f32[8,16], index: 0, kind: input, shape index: {}]
  %s1 = inlined_call_operand.hbm [shape: f32[16,128], index: 1, kind: input, shape index: {}]
  %s2 = inlined_call_operand.vmem [shape: f32[1,128], index: 2, kind: input, shape index: {}]
  %s3 = inlined_call_operand.hbm [shape: f32[128,128], index: 3, kind: input, shape index: {}]
  %s4 = inlined_call_operand.vmem [shape: f32[1,128], index: 4, kind: input, shape index: {}]
  %s5 = inlined_call_operand.hbm [shape: f32[128,128], index: 5, kind: input, shape index: {}]
  %s6 = inlined_call_operand.vmem [shape: f32[1,128], index: 6, kind: input, shape index: {}]
  %s7 = inlined_call_operand.hbm [shape: f32[8,128], index: 7, kind: output, shape index: {}]
  %s8 = sld [smem:[#allocation0]]
  $region54: #{actor_forward.1} parent=0
    _
  %s10 = ssub.s32 1, %s8
  %s11 = scalar_select 0, %s10, %s8
  $region1: #{actor_forward.1} parent=0
    #allocation2 [shape = 'u8[4096]{0}', space=vmem, size = 0x1000, scoped, tag = 'input window, operand 0, single buffered']
    #allocation3 [shape = 's32[1]{0}', space=sflag, size = 0x4, scoped, tag = 'scoped memory for actor_forward.1']
    #allocation4 [shape = 's32[1]{0}', space=sflag, size = 0x4, scoped, tag = 'scoped memory for actor_forward.1']
    #allocation5 [shape = 'u8[8192]{0}', space=vmem, size = 0x2000, scoped, tag = 'input window, operand 1, single buffered']
    #allocation6 [shape = 's32[1]{0}', space=sflag, size = 0x4, scoped, tag = 'scoped memory for actor_forward.1']
    #allocation7 [shape = 'u8[65536]{0}', space=vmem, size = 0x10000, scoped, tag = 'input window, operand 3, single buffered']
    #allocation8 [shape = 'u8[65536]{0}', space=vmem, size = 0x10000, scoped, tag = 'input window, operand 5, single buffered']
    #allocation9 [shape = 's32[1]{0}', space=sflag, size = 0x4, scoped, tag = 'scoped memory for actor_forward.1']
    #allocation10 [shape = 'u8[4096]{0}', space=vmem, size = 0x1000, scoped, tag = 'output window, operand 0, single buffered']
    %12 = vsyncpa [#allocation3], 0
    %13 = vsyncpa [#allocation6], 0
    %14 = vsyncpa [#allocation9], 0
    %15 = vsyncpa [#allocation4], 0
    // Predicated region
    $region2: #{actor_forward.1} parent=1 // pred_check
      _
    $region3: #{actor_forward.1} parent=1 // pred_check_branch
      %17 = sbr.rel (0) target = $region5
    $region4: #{actor_forward.1} parent=1 // pred_region
      %19 = vsyncadd [#allocation3], 0
      %s21 = sshll.u32 %s0, 4
      %s22 = int_to_ptr.hbm [resolvable:$true] %s21
      %s23 = sshll.u32 [#allocation2], 4
      %s24 = int_to_ptr.vmem [resolvable:$true] %s23
      %26 = dma.hbm_to_vmem [thread:$0]  %s22, 128, %s24, [#allocation3]
    $region5: #{actor_forward.1} parent=1 // pred_fallthru
      _
    // Predicated region
    $region6: #{actor_forward.1} parent=1 // pred_check
      _
    $region7: #{actor_forward.1} parent=1 // pred_check_branch
      %28 = sbr.rel (0) target = $region9
    $region8: #{actor_forward.1} parent=1 // pred_region
      %30 = vsyncadd [#allocation6], 0
      %s31 = sshll.u32 %s1, 4
      %s32 = int_to_ptr.hbm [resolvable:$true] %s31
      %s33 = sshll.u32 [#allocation5], 4
      %s34 = int_to_ptr.vmem [resolvable:$true] %s33
      %39 = dma.hbm_to_vmem [thread:$0]  %s32, 256, %s34, [#allocation6], 128, 128, 8
    $region9: #{actor_forward.1} parent=1 // pred_fallthru
      _
    // Predicated region
    $region10: #{actor_forward.1} parent=1 // pred_check
      _
    $region11: #{actor_forward.1} parent=1 // pred_check_branch
      %41 = sbr.rel (0) target = $region13
    $region12: #{actor_forward.1} parent=1 // pred_region
      _
    $region13: #{actor_forward.1} parent=1 // pred_fallthru
      _
    // Predicated region
    $region14: #{actor_forward.1} parent=1 // pred_check
      _
    $region15: #{actor_forward.1} parent=1 // pred_check_branch
      %43 = sbr.rel (0) target = $region17
    $region16: #{actor_forward.1} parent=1 // pred_region
      %45 = vsyncadd [#allocation6], 0
      %s46 = sshll.u32 %s3, 4
      %s47 = int_to_ptr.hbm [resolvable:$true] %s46
      %s48 = sshll.u32 [#allocation7], 4
      %s49 = int_to_ptr.vmem [resolvable:$true] %s48
      %54 = dma.hbm_to_vmem [thread:$0]  %s47, 2048, %s49, [#allocation6], 128, 128, 8
    $region17: #{actor_forward.1} parent=1 // pred_fallthru
      _
    // Predicated region
    $region18: #{actor_forward.1} parent=1 // pred_check
      _
    $region19: #{actor_forward.1} parent=1 // pred_check_branch
      %56 = sbr.rel (0) target = $region21
    $region20: #{actor_forward.1} parent=1 // pred_region
      _
    $region21: #{actor_forward.1} parent=1 // pred_fallthru
      _
    // Predicated region
    $region22: #{actor_forward.1} parent=1 // pred_check
      _
    $region23: #{actor_forward.1} parent=1 // pred_check_branch
      %58 = sbr.rel (0) target = $region25
    $region24: #{actor_forward.1} parent=1 // pred_region
      %60 = vsyncadd [#allocation9], 0
      %s61 = sshll.u32 %s5, 4
      %s62 = int_to_ptr.hbm [resolvable:$true] %s61
      %s63 = sshll.u32 [#allocation8], 4
      %s64 = int_to_ptr.vmem [resolvable:$true] %s63
      %69 = dma.hbm_to_vmem [thread:$0]  %s62, 2048, %s64, [#allocation9], 128, 128, 8
    $region25: #{actor_forward.1} parent=1 // pred_fallthru
      _
    // Predicated region
    $region26: #{actor_forward.1} parent=1 // pred_check
      _
    $region27: #{actor_forward.1} parent=1 // pred_check_branch
      %71 = sbr.rel (0) target = $region29
    $region28: #{actor_forward.1} parent=1 // pred_region
      _
    $region29: #{actor_forward.1} parent=1 // pred_fallthru
      _
    // Predicated region
    $region30: #{actor_forward.1} parent=1 // pred_check
      _
    $region31: #{actor_forward.1} parent=1 // pred_check_branch
      %73 = sbr.rel (0) target = $region33
    $region32: #{actor_forward.1} parent=1 // pred_region
      %75 = dma.done [#allocation3], 128
    $region33: #{actor_forward.1} parent=1 // pred_fallthru
      _
    // Predicated region
    $region34: #{actor_forward.1} parent=1 // pred_check
      _
    $region35: #{actor_forward.1} parent=1 // pred_check_branch
      %77 = sbr.rel (0) target = $region37
    $region36: #{actor_forward.1} parent=1 // pred_region
      %79 = dma.done [#allocation6], 256
    $region37: #{actor_forward.1} parent=1 // pred_fallthru
      _
    // Predicated region
    $region38: #{actor_forward.1} parent=1 // pred_check
      _
    $region39: #{actor_forward.1} parent=1 // pred_check_branch
      %81 = sbr.rel (0) target = $region41
    $region40: #{actor_forward.1} parent=1 // pred_region
      %83 = dma.done [#allocation6], 2048
    $region41: #{actor_forward.1} parent=1 // pred_fallthru
      _
    // Predicated region
    $region42: #{actor_forward.1} parent=1 // pred_check
      _
    $region43: #{actor_forward.1} parent=1 // pred_check_branch
      %85 = sbr.rel (0) target = $region45
    $region44: #{actor_forward.1} parent=1 // pred_region
      %87 = dma.done [#allocation9], 2048
    $region45: #{actor_forward.1} parent=1 // pred_fallthru
      _
    %v88 = vld [vmem:[#allocation2] sm:$0xff]
    %v89 = vld [vmem:[#allocation5] sm:$0xff]
    %v90 = vld [vmem:[#allocation5 + $0x8] sm:$0xff]
    %v91 = vld [vmem:[%s2] sm:$0x1]
    %v93 = vperm.slane %v91, 0
    %vm95 = vcmask 130048
    %v97 = vsel %vm95, %v88, 0
    %99 = vmatpush.msra.mxu0 0.0
    %100 = vmatpush.msra.mxu0 0.0
    %101 = vmatpush.msra.mxu0 0.0
    %102 = vmatpush.msra.mxu0 0.0
    %103 = vmatpush.msra.mxu0 0.0
    %104 = vmatpush.msra.mxu0 0.0
    %105 = vmatpush.msra.mxu0 0.0
    %106 = vmatpush.msra.mxu0 0.0
    %107 = vmatpush.msra.mxu0 0.0
    %108 = vmatpush.msra.mxu0 0.0
    %109 = vmatpush.msra.mxu0 0.0
    %110 = vmatpush.msra.mxu0 0.0
    %111 = vmatpush.msra.mxu0 0.0
    %112 = vmatpush.msra.mxu0 0.0
    %113 = vmatpush.msra.mxu0 %v90
    %114 = vmatpush.msra.mxu0 %v89
    %115 = vmatmul.f32.gmra.mxu0 %v97
    %v116 = vpop.f32.mrf.mxu0
    %v117 = vadd.f32 %v93, %v116
    %118 = vdwg.mxu0
    %v119 = vmax.f32 %v117, 0.0
    %v120 = vld [vmem:[#allocation7] sm:$0xff]
    %v121 = vld [vmem:[#allocation7 + $0x8] sm:$0xff]
    %v122 = vld [vmem:[#allocation7 + $0x10] sm:$0xff]
    %v123 = vld [vmem:[#allocation7 + $0x18] sm:$0xff]
    %v124 = vld [vmem:[#allocation7 + $0x20] sm:$0xff]
    %v125 = vld [vmem:[#allocation7 + $0x28] sm:$0xff]
    %v126 = vld [vmem:[#allocation7 + $0x30] sm:$0xff]
    %v127 = vld [vmem:[#allocation7 + $0x38] sm:$0xff]
    %v128 = vld [vmem:[#allocation7 + $0x40] sm:$0xff]
    %v129 = vld [vmem:[#allocation7 + $0x48] sm:$0xff]
    %v130 = vld [vmem:[#allocation7 + $0x50] sm:$0xff]
    %v131 = vld [vmem:[#allocation7 + $0x58] sm:$0xff]
    %v132 = vld [vmem:[#allocation7 + $0x60] sm:$0xff]
    %v133 = vld [vmem:[#allocation7 + $0x68] sm:$0xff]
    %v134 = vld [vmem:[#allocation7 + $0x70] sm:$0xff]
    %v135 = vld [vmem:[#allocation7 + $0x78] sm:$0xff]
    %v136 = vld [vmem:[%s4] sm:$0x1]
    %v138 = vperm.slane %v136, 0
    %140 = vmatpush.msra.mxu0 %v135
    %141 = vmatpush.msra.mxu0 %v134
    %142 = vmatpush.msra.mxu0 %v133
    %143 = vmatpush.msra.mxu0 %v132
    %144 = vmatpush.msra.mxu0 %v131
    %145 = vmatpush.msra.mxu0 %v130
    %146 = vmatpush.msra.mxu0 %v129
    %147 = vmatpush.msra.mxu0 %v128
    %148 = vmatpush.msra.mxu0 %v127
    %149 = vmatpush.msra.mxu0 %v126
    %150 = vmatpush.msra.mxu0 %v125
    %151 = vmatpush.msra.mxu0 %v124
    %152 = vmatpush.msra.mxu0 %v123
    %153 = vmatpush.msra.mxu0 %v122
    %154 = vmatpush.msra.mxu0 %v121
    %155 = vmatpush.msra.mxu0 %v120
    %156 = vmatmul.f32.gmra.mxu0 %v119
    %v157 = vpop.f32.mrf.mxu0
    %v158 = vadd.f32 %v138, %v157
    %159 = vdwg.mxu0
    %v160 = vmax.f32 %v158, 0.0
    %v161 = vld [vmem:[#allocation8] sm:$0xff]
    %v162 = vld [vmem:[#allocation8 + $0x8] sm:$0xff]
    %v163 = vld [vmem:[#allocation8 + $0x10] sm:$0xff]
    %v164 = vld [vmem:[#allocation8 + $0x18] sm:$0xff]
    %v165 = vld [vmem:[#allocation8 + $0x20] sm:$0xff]
    %v166 = vld [vmem:[#allocation8 + $0x28] sm:$0xff]
    %v167 = vld [vmem:[#allocation8 + $0x30] sm:$0xff]
    %v168 = vld [vmem:[#allocation8 + $0x38] sm:$0xff]
    %v169 = vld [vmem:[#allocation8 + $0x40] sm:$0xff]
    %v170 = vld [vmem:[#allocation8 + $0x48] sm:$0xff]
    %v171 = vld [vmem:[#allocation8 + $0x50] sm:$0xff]
    %v172 = vld [vmem:[#allocation8 + $0x58] sm:$0xff]
    %v173 = vld [vmem:[#allocation8 + $0x60] sm:$0xff]
    %v174 = vld [vmem:[#allocation8 + $0x68] sm:$0xff]
    %v175 = vld [vmem:[#allocation8 + $0x70] sm:$0xff]
    %v176 = vld [vmem:[#allocation8 + $0x78] sm:$0xff]
    %v177 = vld [vmem:[%s6] sm:$0x1]
    %v179 = vperm.slane %v177, 0
    %181 = vmatpush.msra.mxu0 %v176
    %182 = vmatpush.msra.mxu0 %v175
    %183 = vmatpush.msra.mxu0 %v174
    %184 = vmatpush.msra.mxu0 %v173
    %185 = vmatpush.msra.mxu0 %v172
    %186 = vmatpush.msra.mxu0 %v171
    %187 = vmatpush.msra.mxu0 %v170
    %188 = vmatpush.msra.mxu0 %v169
    %189 = vmatpush.msra.mxu0 %v168
    %190 = vmatpush.msra.mxu0 %v167
    %191 = vmatpush.msra.mxu0 %v166
    %192 = vmatpush.msra.mxu0 %v165
    %193 = vmatpush.msra.mxu0 %v164
    %194 = vmatpush.msra.mxu0 %v163
    %195 = vmatpush.msra.mxu0 %v162
    %196 = vmatpush.msra.mxu0 %v161
    %197 = vmatmul.f32.gmra.mxu0 %v160
    %v198 = vpop.f32.mrf.mxu0
    %v199 = vadd.f32 %v179, %v198
    %200 = vdwg.mxu0
    %v201 = vtanh.pop %v199
    %v202 = vmul.f32 %v201, 0.5235988
    %203 = vst [vmem:[#allocation10] sm:$0xff] %v202
    // Predicated region
    $region46: #{actor_forward.1} parent=1 // pred_check
      _
    $region47: #{actor_forward.1} parent=1 // pred_check_branch
      %205 = sbr.rel (0) target = $region49
    $region48: #{actor_forward.1} parent=1 // pred_region
      %207 = vsyncadd [#allocation4], 0
      %s209 = sshll.u32 [#allocation10], 4
      %s210 = int_to_ptr.vmem [resolvable:$true] %s209
      %s211 = sshll.u32 %s7, 4
      %s212 = int_to_ptr.hbm [resolvable:$true] %s211
      %214 = dma.vmem_to_hbm [thread:$0]  %s210, 128, %s212, [#allocation4]
    $region49: #{actor_forward.1} parent=1 // pred_fallthru
      _
    // Predicated region
    $region50: #{actor_forward.1} parent=1 // pred_check
      _
    $region51: #{actor_forward.1} parent=1 // pred_check_branch
      %216 = sbr.rel (0) target = $region53
    $region52: #{actor_forward.1} parent=1 // pred_region
      %218 = dma.done [#allocation4], 128
    $region53: #{actor_forward.1} parent=1 // pred_fallthru
      _
    %219 = vsyncpa [#allocation3], 1
    %220 = vsyncpa [#allocation6], 1
    %221 = vsyncpa [#allocation9], 1
    %222 = vsyncpa [#allocation4], 1

</llo_original>
